<compile_context>
chip_gen: v5e
topology: v5e:2x2
jax: 0.10.0
libtpu: 0.0.40
codegen_flags: <defaults>
</compile_context>

<pallas_src>
import functools

import jax
import jax.numpy as jnp
from jax.experimental import pallas as pl
from jax.experimental.pallas import tpu as pltpu

LANE = 128            # lane width (last-dim tiling unit)
SUBLANE_PAD = 16      # channel padding (bf16 sublane packing)
EPS = 1e-5
VMEM_LIMIT = 32 * 1024 * 1024


def _round_up(x, m):
    return (x + m - 1) // m * m


def _pick_tile(total, target, multiple):
    """Largest divisor of `total` that is a multiple of `multiple` and <= target.

    Falls back to `total` (a full-dim block is always legal for a BlockSpec)."""
    best = None
    d = multiple
    limit = min(total, max(target, multiple))
    while d <= limit:
        if total % d == 0:
            best = d
        d += multiple
    return best if best is not None else total


# ----------------------------- Pallas kernels ------------------------------

def _conv_stats_kernel(w_ref, x_ref, y_ref, ssum_ref, ssq_ref, acc_ref):
    """One (batch, cout-tile, hw-tile) output block, accumulated over K tiles.

    w_ref:    (cout_tile, tile_k)       weights (matmul dtype)
    x_ref:    (1, tile_k, tile_hw)      im2col patches, native (N, K, HW) layout
    y_ref:    (1, cout_tile, tile_hw)   conv output (storage dtype, bf16)
    ssum_ref: (1, 1, cout_tile, 1)      per-tile sum(y)    (f32)
    ssq_ref:  (1, 1, cout_tile, 1)      per-tile sum(y*y)  (f32)
    acc_ref:  (cout_tile, tile_hw)      f32 VMEM accumulator (scratch)
    """
    kk = pl.program_id(3)

    @pl.when(kk == 0)
    def _():
        acc_ref[...] = jnp.zeros_like(acc_ref)

    acc_ref[...] += jnp.dot(w_ref[...], x_ref[0],
                            preferred_element_type=jnp.float32)

    @pl.when(kk == pl.num_programs(3) - 1)
    def _():
        y = acc_ref[...]                               # f32, full precision
        y_ref[0] = y.astype(y_ref.dtype)
        # Per-channel partial stats: reduce over the spatial (lane) axis.
        ssum_ref[0, 0] = jnp.sum(y, axis=1, keepdims=True)
        ssq_ref[0, 0] = jnp.sum(y * y, axis=1, keepdims=True)


def _bn_act_kernel(y_ref, scale_ref, bias_ref, o_ref, *, relu):
    """out = relu(y * scale + bias); crops padded channels at the store.

    y_ref:     (1, cout_pad, tile_hw2)  bf16 conv output
    scale_ref: (cout_pad, 1)            gamma * rsqrt(var + eps)
    bias_ref:  (cout_pad, 1)            beta - mean * scale
    o_ref:     (1, cout, tile_hw2)      final f32 output (channel-major)
    """
    y = y_ref[0].astype(jnp.float32)
    out = y * scale_ref[...] + bias_ref[...]
    if relu:
        out = jnp.maximum(out, 0.0)
    o_ref[0] = out[: o_ref.shape[1], :]


# ------------------------------- wrapper ------------------------------------

def bn_conv2d_forward(x, conv_weight, gamma, beta, *, stride=1, padding=1,
                      dilation=1, activation=True,
                      matmul_dtype=jnp.bfloat16, y_dtype=jnp.bfloat16):
    """Forward of BN_Conv2d (groups=1, bias=False).

    x: (N, Cin, H, W) f32     conv_weight: (Cout, Cin, KH, KW) f32
    gamma/beta: (Cout,) f32   returns (N, Cout, OH, OW) f32
    """
    n, cin, _, _ = x.shape
    cout, _, kh, kw = conv_weight.shape

    # ---- im2col in NATIVE (N, K, OH, OW) layout; feature order (cin, kh, kw)
    #      matches conv_weight.reshape(cout, -1).  Cast x first so the (9x
    #      larger) patches array is produced directly in the matmul dtype.
    patches = jax.lax.conv_general_dilated_patches(
        x.astype(matmul_dtype), filter_shape=(kh, kw),
        window_strides=(stride, stride),
        padding=((padding, padding), (padding, padding)),
        rhs_dilation=(dilation, dilation))
    k, oh, ow = patches.shape[1], patches.shape[2], patches.shape[3]
    hw = oh * ow
    m = n * hw                                   # true BN count per channel

    # ---- tiling ----------------------------------------------------------
    cout_pad = _round_up(cout, SUBLANE_PAD)      # channels on sublanes
    if cout_pad > 256:
        cout_tile = 256
        cout_pad = _round_up(cout, cout_tile)
    else:
        cout_tile = cout_pad
    hw_pad = _round_up(hw, LANE)                 # spatial on lanes
    tile_hw = _pick_tile(hw_pad, 512, LANE)      # MXU output lanes >= 256 when big
    tile_k = _pick_tile(k, 1024, LANE)           # contraction tile (or full K)
    num_c = cout_pad // cout_tile
    num_j = hw_pad // tile_hw
    num_k = k // tile_k

    patches = patches.reshape(n, k, hw)          # free reshape (row-major)
    if hw_pad != hw:
        # Zero rows contribute 0 to sum/sumsq; divisor below is the true m.
        patches = jnp.pad(patches, ((0, 0), (0, 0), (0, hw_pad - hw)))

    w_mat = conv_weight.reshape(cout, k)
    w_mat = jnp.pad(w_mat, ((0, cout_pad - cout), (0, 0))).astype(matmul_dtype)

    # ---- kernel 1: conv matmul (K-accumulated) + per-tile partial BN stats --
    y, ssum, ssq = pl.pallas_call(
        _conv_stats_kernel,
        out_shape=(jax.ShapeDtypeStruct((n, cout_pad, hw_pad), y_dtype),
                   jax.ShapeDtypeStruct((n, num_j, cout_pad, 1), jnp.float32),
                   jax.ShapeDtypeStruct((n, num_j, cout_pad, 1), jnp.float32)),
        grid_spec=pltpu.PrefetchScalarGridSpec(
            num_scalar_prefetch=0,
            grid=(n, num_c, num_j, num_k),
            in_specs=[
                pl.BlockSpec((cout_tile, tile_k),
                             lambda b, c, j, kk: (c, kk)),
                pl.BlockSpec((1, tile_k, tile_hw),
                             lambda b, c, j, kk: (b, kk, j)),
            ],
            out_specs=(
                pl.BlockSpec((1, cout_tile, tile_hw),
                             lambda b, c, j, kk: (b, c, j)),
                pl.BlockSpec((1, 1, cout_tile, 1),
                             lambda b, c, j, kk: (b, j, c, 0)),
                pl.BlockSpec((1, 1, cout_tile, 1),
                             lambda b, c, j, kk: (b, j, c, 0)),
            ),
            scratch_shapes=[pltpu.VMEM((cout_tile, tile_hw), jnp.float32)],
        ),
        compiler_params=pltpu.CompilerParams(
            dimension_semantics=("parallel", "parallel", "parallel", "arbitrary"),
            vmem_limit_bytes=VMEM_LIMIT),
    )(w_mat, patches)

    # ---- fold partial stats -> per-channel scale / bias (tiny, XLA) --------
    # Two-level f32 sum (per-tile lane reduce + cross-tile sum) for precision.
    sums = jnp.sum(ssum, axis=(0, 1))[:, 0]                  # (cout_pad,)
    sqs = jnp.sum(ssq, axis=(0, 1))[:, 0]
    mean = sums / m
    var = jnp.maximum(sqs / m - mean * mean, 0.0)            # biased var (BN)
    inv_std = jax.lax.rsqrt(var + EPS)
    gamma_p = jnp.pad(gamma.astype(jnp.float32), (0, cout_pad - cout))
    beta_p = jnp.pad(beta.astype(jnp.float32), (0, cout_pad - cout))
    scale = (gamma_p * inv_std).reshape(cout_pad, 1)
    bias = (beta_p - mean * gamma_p * inv_std).reshape(cout_pad, 1)

    # ---- kernel 2: normalize (+ ReLU), write final channel-major layout ----
    tile_hw2 = _pick_tile(
        hw_pad, max(LANE, min(8192, (1 << 22) // (6 * cout_pad))), LANE)
    out = pl.pallas_call(
        functools.partial(_bn_act_kernel, relu=activation),
        out_shape=jax.ShapeDtypeStruct((n, cout, hw_pad), jnp.float32),
        grid_spec=pltpu.PrefetchScalarGridSpec(
            num_scalar_prefetch=0,
            grid=(n, hw_pad // tile_hw2),
            in_specs=[pl.BlockSpec((1, cout_pad, tile_hw2),
                                   lambda b, j: (b, 0, j)),
                      pl.BlockSpec((cout_pad, 1), lambda b, j: (0, 0)),
                      pl.BlockSpec((cout_pad, 1), lambda b, j: (0, 0))],
            out_specs=pl.BlockSpec((1, cout, tile_hw2),
                                   lambda b, j: (b, 0, j)),
        ),
        compiler_params=pltpu.CompilerParams(
            dimension_semantics=("parallel", "parallel"),
            vmem_limit_bytes=VMEM_LIMIT),
    )(y, scale, bias)

    # Output is already NCHW channel-major: reshape is free. The hw crop only
    # costs a pass when OH*OW is not a multiple of 128.
    if hw_pad != hw:
        out = out[:, :, :hw]
    return out.reshape(n, cout, oh, ow)


# ------------------------------ reference ------------------------------------

def _reference(x, w, gamma, beta, stride, padding, dilation, activation):
    y = jax.lax.conv_general_dilated(
        x, w, window_strides=(stride, stride),
        padding=((padding, padding), (padding, padding)),
        rhs_dilation=(dilation, dilation),
        dimension_numbers=("NCHW", "OIHW", "NCHW"))
    mean = jnp.mean(y, axis=(0, 2, 3), keepdims=True)
    var = jnp.mean((y - mean) ** 2, axis=(0, 2, 3), keepdims=True)
    out = (y - mean) * jax.lax.rsqrt(var + EPS)
    out = out * gamma.reshape(1, -1, 1, 1) + beta.reshape(1, -1, 1, 1)
    return jnp.maximum(out, 0.0) if activation else out


# --------------------------------- main --------------------------------------

if __name__ == "__main__":
    key = jax.random.PRNGKey(0)
    k_x, k_w = jax.random.split(key)

    # BN_Conv2d(in_channels=4, out_channels=8, kernel_size=3, stride=1, padding=1)
    N, Cin, H, W = 2, 4, 16, 16
    Cout, KH, KW = 8, 3, 3

    x = jax.random.normal(k_x, (N, Cin, H, W), dtype=jnp.float32)
    conv_weight = jax.random.normal(k_w, (Cout, Cin, KH, KW), dtype=jnp.float32) * 0.1
    gamma = jnp.ones((Cout,), dtype=jnp.float32)   # BatchNorm2d default init
    beta = jnp.zeros((Cout,), dtype=jnp.float32)

    fwd = jax.jit(functools.partial(bn_conv2d_forward, stride=1, padding=1,
                                    dilation=1, activation=True))
    out = jax.block_until_ready(fwd(x, conv_weight, gamma, beta))
    assert out.shape == (N, Cout, H, W), out.shape

    ref = _reference(x, conv_weight, gamma, beta, 1, 1, 1, True)
    max_err = float(jnp.max(jnp.abs(out - ref)))
    assert max_err < 1e-1, f"max abs err {max_err}"
    print("KERNEL_OK")
</pallas_src>

<mosaic_0001>
module attributes {stable_mosaic.version = 11 : i64} {
  func.func @_conv_stats_kernel(%arg0: i32, %arg1: i32, %arg2: i32, %arg3: i32, %arg4: memref<16x36xbf16, #tpu.memory_space<vmem>>, %arg5: memref<1x36x256xbf16, #tpu.memory_space<vmem>>, %arg6: memref<1x16x256xbf16, #tpu.memory_space<vmem>>, %arg7: memref<1x1x16x1xf32, #tpu.memory_space<vmem>>, %arg8: memref<1x1x16x1xf32, #tpu.memory_space<vmem>>, %arg9: memref<16x256xf32, #tpu.memory_space<vmem>>) attributes {dimension_semantics = [#tpu.dimension_semantics<parallel>, #tpu.dimension_semantics<parallel>, #tpu.dimension_semantics<parallel>, #tpu.dimension_semantics<arbitrary>], iteration_bounds = array<i64: 2, 1, 1, 1>, scalar_prefetch = 0 : i64, scratch_operands = 1 : i64, tpu.core_type = #tpu.core_type<tc>, window_params = [{transform_indices = @transform_0, window_bounds = array<i64: 16, 36>}, {transform_indices = @transform_1, window_bounds = array<i64: 1, 36, 256>}, {transform_indices = @transform_2, window_bounds = array<i64: 1, 16, 256>}, {transform_indices = @transform_3, window_bounds = array<i64: 1, 1, 16, 1>}, {transform_indices = @transform_4, window_bounds = array<i64: 1, 1, 16, 1>}]} {
    %c0_i32 = arith.constant 0 : i32
    %0 = arith.cmpi eq, %arg3, %c0_i32 : i32
    %1 = arith.extui %0 : i1 to i32
    %c0_i32_0 = arith.constant 0 : i32
    %2 = arith.cmpi ne, %1, %c0_i32_0 : i32
    scf.if %2 {
      %cst_11 = arith.constant 0.000000e+00 : f32
      %13 = vector.broadcast %cst_11 : f32 to vector<16x256xf32>
      %c0_12 = arith.constant 0 : index
      %c0_13 = arith.constant 0 : index
      %14 = vector.load %arg9[%c0_12, %c0_13] : memref<16x256xf32, #tpu.memory_space<vmem>>, vector<16x256xf32>
      tpu.vector_store %arg9[%c0_12, %c0_13], %13 {strides = array<i32>} : memref<16x256xf32, #tpu.memory_space<vmem>>, vector<16x256xf32>,
    } else {
    }
    %c0 = arith.constant 0 : index
    %c0_1 = arith.constant 0 : index
    %3 = vector.load %arg9[%c0, %c0_1] : memref<16x256xf32, #tpu.memory_space<vmem>>, vector<16x256xf32>
    %c0_2 = arith.constant 0 : index
    %c0_3 = arith.constant 0 : index
    %4 = vector.load %arg4[%c0_2, %c0_3] : memref<16x36xbf16, #tpu.memory_space<vmem>>, vector<16x36xbf16>
    %c0_4 = arith.constant 0 : index
    %c0_5 = arith.constant 0 : index
    %c0_6 = arith.constant 0 : index
    %5 = vector.load %arg5[%c0_4, %c0_5, %c0_6] : memref<1x36x256xbf16, #tpu.memory_space<vmem>>, vector<1x36x256xbf16>
    %6 = vector.shape_cast %5 : vector<1x36x256xbf16> to vector<36x256xbf16>
    %cst = arith.constant dense<0.000000e+00> : vector<16x256xf32>
    %7 = tpu.matmul %4, %6, %cst {dimension_numbers = #tpu.dot_dimension_numbers<[1], [0], [0], [1], [0, 0, 1, 1], [], []>} : vector<16x36xbf16>, vector<36x256xbf16>, vector<16x256xf32> -> vector<16x256xf32>
    %8 = arith.addf %3, %7 : vector<16x256xf32>
    %c0_7 = arith.constant 0 : index
    %c0_8 = arith.constant 0 : index
    %9 = vector.load %arg9[%c0_7, %c0_8] : memref<16x256xf32, #tpu.memory_space<vmem>>, vector<16x256xf32>
    tpu.vector_store %arg9[%c0_7, %c0_8], %8 {strides = array<i32>} : memref<16x256xf32, #tpu.memory_space<vmem>>, vector<16x256xf32>,
    %c0_i32_9 = arith.constant 0 : i32
    %10 = arith.cmpi eq, %arg3, %c0_i32_9 : i32
    %11 = arith.extui %10 : i1 to i32
    %c0_i32_10 = arith.constant 0 : i32
    %12 = arith.cmpi ne, %11, %c0_i32_10 : i32
    scf.if %12 {
      %c0_11 = arith.constant 0 : index
      %c0_12 = arith.constant 0 : index
      %13 = vector.load %arg9[%c0_11, %c0_12] : memref<16x256xf32, #tpu.memory_space<vmem>>, vector<16x256xf32>
      %14 = arith.truncf %13 : vector<16x256xf32> to vector<16x256xbf16>
      %c0_13 = arith.constant 0 : index
      %c0_14 = arith.constant 0 : index
      %c0_15 = arith.constant 0 : index
      %15 = vector.load %arg6[%c0_13, %c0_14, %c0_15] : memref<1x16x256xbf16, #tpu.memory_space<vmem>>, vector<1x16x256xbf16>
      %16 = vector.shape_cast %15 : vector<1x16x256xbf16> to vector<16x256xbf16>
      %17 = vector.shape_cast %14 : vector<16x256xbf16> to vector<1x16x256xbf16>
      tpu.vector_store %arg6[%c0_13, %c0_14, %c0_15], %17 {strides = array<i32>} : memref<1x16x256xbf16, #tpu.memory_space<vmem>>, vector<1x16x256xbf16>,
      %cst_16 = arith.constant dense<0.000000e+00> : vector<16xf32>
      %18 = vector.multi_reduction <add>, %13, %cst_16 [1] : vector<16x256xf32> to vector<16xf32>
      %19 = vector.shape_cast %18 : vector<16xf32> to vector<16x1xf32>
      %c0_17 = arith.constant 0 : index
      %c0_18 = arith.constant 0 : index
      %c0_19 = arith.constant 0 : index
      %c0_20 = arith.constant 0 : index
      %20 = vector.load %arg7[%c0_17, %c0_18, %c0_19, %c0_20] : memref<1x1x16x1xf32, #tpu.memory_space<vmem>>, vector<1x1x16x1xf32>
      %21 = vector.shape_cast %20 : vector<1x1x16x1xf32> to vector<16x1xf32>
      %22 = vector.shape_cast %19 : vector<16x1xf32> to vector<1x1x16x1xf32>
      tpu.vector_store %arg7[%c0_17, %c0_18, %c0_19, %c0_20], %22 {strides = array<i32>} : memref<1x1x16x1xf32, #tpu.memory_space<vmem>>, vector<1x1x16x1xf32>,
      %23 = arith.mulf %13, %13 : vector<16x256xf32>
      %cst_21 = arith.constant dense<0.000000e+00> : vector<16xf32>
      %24 = vector.multi_reduction <add>, %23, %cst_21 [1] : vector<16x256xf32> to vector<16xf32>
      %25 = vector.shape_cast %24 : vector<16xf32> to vector<16x1xf32>
      %c0_22 = arith.constant 0 : index
      %c0_23 = arith.constant 0 : index
      %c0_24 = arith.constant 0 : index
      %c0_25 = arith.constant 0 : index
      %26 = vector.load %arg8[%c0_22, %c0_23, %c0_24, %c0_25] : memref<1x1x16x1xf32, #tpu.memory_space<vmem>>, vector<1x1x16x1xf32>
      %27 = vector.shape_cast %26 : vector<1x1x16x1xf32> to vector<16x1xf32>
      %28 = vector.shape_cast %25 : vector<16x1xf32> to vector<1x1x16x1xf32>
      tpu.vector_store %arg8[%c0_22, %c0_23, %c0_24, %c0_25], %28 {strides = array<i32>} : memref<1x1x16x1xf32, #tpu.memory_space<vmem>>, vector<1x1x16x1xf32>,
    } else {
    }
    return
  }
  func.func @transform_0(%arg0: i32, %arg1: i32, %arg2: i32, %arg3: i32) -> (i32, i32) {
    %c0_i32 = arith.constant 0 : i32
    return %arg1, %arg3 : i32, i32
  }
  func.func @transform_1(%arg0: i32, %arg1: i32, %arg2: i32, %arg3: i32) -> (i32, i32, i32) {
    %c0_i32 = arith.constant 0 : i32
    return %arg0, %arg3, %arg2 : i32, i32, i32
  }
  func.func @transform_2(%arg0: i32, %arg1: i32, %arg2: i32, %arg3: i32) -> (i32, i32, i32) {
    %c0_i32 = arith.constant 0 : i32
    return %arg0, %arg1, %arg2 : i32, i32, i32
  }
  func.func @transform_3(%arg0: i32, %arg1: i32, %arg2: i32, %arg3: i32) -> (i32, i32, i32, i32) {
    %c0_i32 = arith.constant 0 : i32
    %c0_i32_0 = arith.constant 0 : i32
    return %arg0, %arg2, %arg1, %c0_i32 : i32, i32, i32, i32
  }
  func.func @transform_4(%arg0: i32, %arg1: i32, %arg2: i32, %arg3: i32) -> (i32, i32, i32, i32) {
    %c0_i32 = arith.constant 0 : i32
    %c0_i32_0 = arith.constant 0 : i32
    return %arg0, %arg2, %arg1, %c0_i32 : i32, i32, i32, i32
  }
}

module attributes {stable_mosaic.version = 11 : i64} {
  func.func @_bn_act_kernel(%arg0: i32, %arg1: i32, %arg2: memref<1x16x256xbf16, #tpu.memory_space<vmem>>, %arg3: memref<16x1xf32, #tpu.memory_space<vmem>>, %arg4: memref<16x1xf32, #tpu.memory_space<vmem>>, %arg5: memref<1x8x256xf32, #tpu.memory_space<vmem>>) attributes {dimension_semantics = [#tpu.dimension_semantics<parallel>, #tpu.dimension_semantics<parallel>], iteration_bounds = array<i64: 2, 1>, scalar_prefetch = 0 : i64, scratch_operands = 0 : i64, tpu.core_type = #tpu.core_type<tc>, window_params = [{transform_indices = @transform_0, window_bounds = array<i64: 1, 16, 256>}, {pipeline_mode = #tpu.pipeline_mode<synchronous>, transform_indices = @transform_1, window_bounds = array<i64: 16, 1>}, {pipeline_mode = #tpu.pipeline_mode<synchronous>, transform_indices = @transform_2, window_bounds = array<i64: 16, 1>}, {transform_indices = @transform_3, window_bounds = array<i64: 1, 8, 256>}]} {
    %c0 = arith.constant 0 : index
    %c0_0 = arith.constant 0 : index
    %c0_1 = arith.constant 0 : index
    %0 = vector.load %arg2[%c0, %c0_0, %c0_1] : memref<1x16x256xbf16, #tpu.memory_space<vmem>>, vector<1x16x256xbf16>
    %1 = vector.shape_cast %0 : vector<1x16x256xbf16> to vector<16x256xbf16>
    %2 = arith.extf %1 : vector<16x256xbf16> to vector<16x256xf32>
    %c0_2 = arith.constant 0 : index
    %c0_3 = arith.constant 0 : index
    %3 = vector.load %arg3[%c0_2, %c0_3] : memref<16x1xf32, #tpu.memory_space<vmem>>, vector<16x1xf32>
    %4 = vector.broadcast %3 : vector<16x1xf32> to vector<16x256xf32>
    %5 = arith.mulf %2, %4 : vector<16x256xf32>
    %c0_4 = arith.constant 0 : index
    %c0_5 = arith.constant 0 : index
    %6 = vector.load %arg4[%c0_4, %c0_5] : memref<16x1xf32, #tpu.memory_space<vmem>>, vector<16x1xf32>
    %7 = vector.broadcast %6 : vector<16x1xf32> to vector<16x256xf32>
    %8 = arith.addf %5, %7 : vector<16x256xf32>
    %cst = arith.constant 0.000000e+00 : f32
    %9 = vector.broadcast %cst : f32 to vector<16x256xf32>
    %10 = arith.maximumf %8, %9 : vector<16x256xf32>
    %11 = vector.extract_strided_slice %10 {offsets = [0, 0], sizes = [8, 256], strides = [1, 1]} : vector<16x256xf32> to vector<8x256xf32>
    %c0_6 = arith.constant 0 : index
    %c0_7 = arith.constant 0 : index
    %c0_8 = arith.constant 0 : index
    %12 = vector.load %arg5[%c0_6, %c0_7, %c0_8] : memref<1x8x256xf32, #tpu.memory_space<vmem>>, vector<1x8x256xf32>
    %13 = vector.shape_cast %12 : vector<1x8x256xf32> to vector<8x256xf32>
    %14 = vector.shape_cast %11 : vector<8x256xf32> to vector<1x8x256xf32>
    tpu.vector_store %arg5[%c0_6, %c0_7, %c0_8], %14 {strides = array<i32>} : memref<1x8x256xf32, #tpu.memory_space<vmem>>, vector<1x8x256xf32>,
    return
  }
  func.func @transform_0(%arg0: i32, %arg1: i32) -> (i32, i32, i32) {
    %c0_i32 = arith.constant 0 : i32
    %c0_i32_0 = arith.constant 0 : i32
    return %arg0, %c0_i32, %arg1 : i32, i32, i32
  }
  func.func @transform_1(%arg0: i32, %arg1: i32) -> (i32, i32) {
    %c0_i32 = arith.constant 0 : i32
    %c0_i32_0 = arith.constant 0 : i32
    %c0_i32_1 = arith.constant 0 : i32
    return %c0_i32, %c0_i32_0 : i32, i32
  }
  func.func @transform_2(%arg0: i32, %arg1: i32) -> (i32, i32) {
    %c0_i32 = arith.constant 0 : i32
    %c0_i32_0 = arith.constant 0 : i32
    %c0_i32_1 = arith.constant 0 : i32
    return %c0_i32, %c0_i32_0 : i32, i32
  }
  func.func @transform_3(%arg0: i32, %arg1: i32) -> (i32, i32, i32) {
    %c0_i32 = arith.constant 0 : i32
    %c0_i32_0 = arith.constant 0 : i32
    return %arg0, %c0_i32, %arg1 : i32, i32, i32
  }
}

</mosaic_0001>

<llo_original>
// kernel: bn_conv2d_forward.3
$region0: #{bn_conv2d_forward.3}
  #allocation0 [shape = 'u32[]', space=smem, size = 0x4, offset = 0x4, fixed_abs, tag = 'smem constant byte address 0x4 - core index']
  #allocation1 [shape = 'u32[72,128]{1,0:T(1,128)}', space=vmem, size = 0x9000, scoped, tag = 'internal scratch']
  %s0 = inlined_call_operand.vmem [shape: bf16[2,16,256], index: 0, kind: input, shape index: {}]
  %s1 = inlined_call_operand.vmem [shape: f32[16,1], index: 1, kind: input, shape index: {}]
  %s2 = inlined_call_operand.vmem [shape: f32[16,1], index: 2, kind: input, shape index: {}]
  %s3 = inlined_call_operand.vmem [shape: f32[2,8,256], index: 3, kind: output, shape index: {}]
  %s4 = sld [smem:[#allocation0]]
  $region45: #{bn_conv2d_forward.3} parent=0
    _
  %s6 = ssub.s32 1, %s4
  %s7 = scalar_select 0, %s6, %s4
  loop: start=0, step=1, limit=4
  $region2: #{bn_conv2d_forward.3} parent=0 // loop_pre_header
    _
  $region3: #{bn_conv2d_forward.3} parent=0 // loop_header
    %s9 = sphi 0, %s13
    %p10 = scmp.ge.s32.totalorder %s9, 4
    %s16 = sphi 0, %s28
    %s17 = sphi 0, %s24
    %s18 = sphi 0, %s16
    %s19 = sphi 0, %s17
    %s20 = sphi 0, %s18
    %s21 = sphi 0, %s19
    %s33 = sphi 0, %s35
    %s36 = sphi 0, %s33
    %s37 = sphi 0, %s36
    %s53 = sphi 0, %s37
    %s57 = sphi 0, %s57
    %s59 = sphi 0, %s57
    %s60 = sphi 0, %s59
    %s74 = sphi 0, %s60
    %s78 = sphi 0, %s78
    %s80 = sphi 0, %s78
    %s81 = sphi 0, %s80
    %s95 = sphi 0, %s81
    %s103 = sphi 0, %s105
    %s106 = sphi 0, %s103
    %s107 = sphi 0, %s106
    %s123 = sphi 0, %s107
  $region4: #{bn_conv2d_forward.3} parent=0 // loop_header_branch
    %12 = sbr.rel (%p10) target = $region8
  $region5: #{bn_conv2d_forward.3} parent=0 // loop_body
    %s14 = ssub.s32 %s9, 1
    %s15 = ssub.s32 %s9, 2
    %s22 = sadd.s32 1, %s17
    %p23 = scmp.ge.s32.totalorder %s22, 1
    %s24 = scalar_select %p23, 0, %s22
    %s25 = sadd.s32 1, %s16
    %s26 = scalar_select %p23, %s25, %s16
    %p27 = scmp.ge.s32.totalorder %s26, 2
    %s28 = scalar_select %p27, 0, %s26
    %s29 = ssub.s32 %s16, %s28
    %s30 = ssub.s32 %s17, %s24
    %s31 = sor.u32 %s29, %s30
    %p32 = scmp.eq.s32.totalorder %s31, 0
    %s34 = sadd.s32 %s33, 1
    %s35 = scalar_select %p32, %s33, %s34
    %p38 = pneg %p32
    %p39 = scmp.eq.s32.totalorder %s9, 1
    %p40 = por %p38, %p39
    %p41 = scmp.ne.s32.totalorder %s33, %s36
    %p42 = scmp.eq.s32.totalorder %s9, 0
    %p43 = por %p41, %p42
    %p44 = scmp.ne.s32.totalorder %s33, %s36
    %p45 = scmp.eq.s32.totalorder %s14, 1
    %p46 = por %p44, %p45
    %p47 = scmp.ne.s32.totalorder %s36, %s37
    %p48 = scmp.eq.s32.totalorder %s14, 0
    %p49 = por %p47, %p48
    %p50 = scmp.ne.s32.totalorder %s36, %s37
    %p51 = scmp.eq.s32.totalorder %s15, 1
    %p52 = por %p50, %p51
    %p54 = scmp.ne.s32.totalorder %s37, %s53
    %p55 = scmp.eq.s32.totalorder %s15, 0
    %p56 = por %p54, %p55
    %s58 = sadd.s32 %s57, 1
    %p61 = scmp.eq.s32.totalorder %s9, 1
    %p62 = scmp.ne.s32.totalorder %s57, %s59
    %p63 = scmp.eq.s32.totalorder %s9, 0
    %p64 = por %p62, %p63
    %p65 = scmp.ne.s32.totalorder %s57, %s59
    %p66 = scmp.eq.s32.totalorder %s14, 1
    %p67 = por %p65, %p66
    %p68 = scmp.ne.s32.totalorder %s59, %s60
    %p69 = scmp.eq.s32.totalorder %s14, 0
    %p70 = por %p68, %p69
    %p71 = scmp.ne.s32.totalorder %s59, %s60
    %p72 = scmp.eq.s32.totalorder %s15, 1
    %p73 = por %p71, %p72
    %p75 = scmp.ne.s32.totalorder %s60, %s74
    %p76 = scmp.eq.s32.totalorder %s15, 0
    %p77 = por %p75, %p76
    %s79 = sadd.s32 %s78, 1
    %p82 = scmp.eq.s32.totalorder %s9, 1
    %p83 = scmp.ne.s32.totalorder %s78, %s80
    %p84 = scmp.eq.s32.totalorder %s9, 0
    %p85 = por %p83, %p84
    %p86 = scmp.ne.s32.totalorder %s78, %s80
    %p87 = scmp.eq.s32.totalorder %s14, 1
    %p88 = por %p86, %p87
    %p89 = scmp.ne.s32.totalorder %s80, %s81
    %p90 = scmp.eq.s32.totalorder %s14, 0
    %p91 = por %p89, %p90
    %p92 = scmp.ne.s32.totalorder %s80, %s81
    %p93 = scmp.eq.s32.totalorder %s15, 1
    %p94 = por %p92, %p93
    %p96 = scmp.ne.s32.totalorder %s81, %s95
    %p97 = scmp.eq.s32.totalorder %s15, 0
    %p98 = por %p96, %p97
    %s99 = ssub.s32 %s16, %s28
    %s100 = ssub.s32 %s17, %s24
    %s101 = sor.u32 %s99, %s100
    %p102 = scmp.eq.s32.totalorder %s101, 0
    %s104 = sadd.s32 %s103, 1
    %s105 = scalar_select %p102, %s103, %s104
    %p108 = pneg %p102
    %p109 = scmp.eq.s32.totalorder %s9, 1
    %p110 = por %p108, %p109
    %p111 = scmp.ne.s32.totalorder %s103, %s106
    %p112 = scmp.eq.s32.totalorder %s9, 0
    %p113 = por %p111, %p112
    %p114 = scmp.ne.s32.totalorder %s103, %s106
    %p115 = scmp.eq.s32.totalorder %s14, 1
    %p116 = por %p114, %p115
    %p117 = scmp.ne.s32.totalorder %s106, %s107
    %p118 = scmp.eq.s32.totalorder %s14, 0
    %p119 = por %p117, %p118
    %p120 = scmp.ne.s32.totalorder %s106, %s107
    %p121 = scmp.eq.s32.totalorder %s15, 1
    %p122 = por %p120, %p121
    %p124 = scmp.ne.s32.totalorder %s107, %s123
    %p125 = scmp.eq.s32.totalorder %s15, 0
    %p126 = por %p124, %p125
    %p127 = scmp.le.s32.totalorder 1, %s9
    %p128 = scmp.lt.s32.totalorder %s9, 3
    %p129 = pnand %p127, %p128
    %p130 = pneg %p129
    // Predicated region
    $region9: #{bn_conv2d_forward.3} parent=5 // pred_check
      _
    $region10: #{bn_conv2d_forward.3} parent=5 // pred_check_branch
      %132 = sbr.rel (%p129) target = $region12
    $region11: #{bn_conv2d_forward.3} parent=5 // pred_region
      %s133 = ssub.s32 %s9, 1
      // Predicated region
      $region13: #{bn_conv2d_forward.3} parent=11 // pred_check
        %p134 = pneg %p70
      $region14: #{bn_conv2d_forward.3} parent=11 // pred_check_branch
        %136 = sbr.rel (%p134) target = $region16
      $region15: #{bn_conv2d_forward.3} parent=11 // pred_region
        _
      $region16: #{bn_conv2d_forward.3} parent=11 // pred_fallthru
        _
      // Predicated region
      $region17: #{bn_conv2d_forward.3} parent=11 // pred_check
        %p137 = pneg %p91
      $region18: #{bn_conv2d_forward.3} parent=11 // pred_check_branch
        %139 = sbr.rel (%p137) target = $region20
      $region19: #{bn_conv2d_forward.3} parent=11 // pred_region
        _
      $region20: #{bn_conv2d_forward.3} parent=11 // pred_fallthru
        _
    $region12: #{bn_conv2d_forward.3} parent=5 // pred_fallthru
      _
    %p140 = scmp.lt.s32.totalorder %s9, 2
    // Predicated region
    $region21: #{bn_conv2d_forward.3} parent=5 // pred_check
      %p141 = pneg %p140
    $region22: #{bn_conv2d_forward.3} parent=5 // pred_check_branch
      %143 = sbr.rel (%p141) target = $region24
    $region23: #{bn_conv2d_forward.3} parent=5 // pred_region
      // Predicated region
      $region25: #{bn_conv2d_forward.3} parent=23 // pred_check
        %p144 = pneg %p43
      $region26: #{bn_conv2d_forward.3} parent=23 // pred_check_branch
        %146 = sbr.rel (%p144) target = $region28
      $region27: #{bn_conv2d_forward.3} parent=23 // pred_region
        %s147 = smul.u32 2, %s17
        %p148 = scmp.lt.s32.totalorder %s16, 1
        %s149 = scalar_select %p148, %s16, 1
        %p150 = scmp.lt.s32.totalorder %s147, 1
        %s151 = scalar_select %p150, %s147, 1
        %s152 = smul.addr %s149, 4
        %s153 = sadd.s32 %s151, %s152
        %s154 = smul.addr %s153, 4
        %s155 = scalar_lea.vmem %s0, %s154
        %s156 = smul.u32 2, %s17
      $region28: #{bn_conv2d_forward.3} parent=23 // pred_fallthru
        _
    $region24: #{bn_conv2d_forward.3} parent=5 // pred_fallthru
      _
    %p157 = scmp.le.s32.totalorder 1, %s9
    %p158 = scmp.lt.s32.totalorder %s9, 3
    %p159 = pnand %p157, %p158
    %p160 = pneg %p159
    // Predicated region
    $region29: #{bn_conv2d_forward.3} parent=5 // pred_check
      _
    $region30: #{bn_conv2d_forward.3} parent=5 // pred_check_branch
      %162 = sbr.rel (%p159) target = $region32
    $region31: #{bn_conv2d_forward.3} parent=5 // pred_region
      %s163 = ssub.s32 %s9, 1
      %s164 = smul.u32 2, %s19
      %p165 = scmp.lt.s32.totalorder %s18, 1
      %s166 = scalar_select %p165, %s18, 1
      %p167 = scmp.lt.s32.totalorder %s164, 1
      %s168 = scalar_select %p167, %s164, 1
      %s169 = smul.addr %s166, 4
      %s170 = sadd.s32 %s168, %s169
      %s171 = smul.addr %s170, 4
      %s172 = scalar_lea.vmem %s0, %s171
      %p173 = pneg %p49
      %p174 = pneg %p46
      %p175 = pneg %p70
      %p176 = pneg %p67
      %p177 = pneg %p91
      %p178 = pneg %p88
      %p179 = pneg %p119
      %p180 = pneg %p116
      %s181 = smul.u32 2, %s19
      %p182 = scmp.lt.s32.totalorder %s18, 1
      %s183 = scalar_select %p182, %s18, 1
      %p184 = scmp.lt.s32.totalorder %s181, 1
      %s185 = scalar_select %p184, %s181, 1
      %s186 = smul.addr %s183, 2
      %s187 = sadd.s32 %s185, %s186
      %s188 = smul.addr %s187, 8
      %s189 = scalar_lea.vmem %s3, %s188
      %s190 = smul.u32 2, %s19
      %p191 = scmp.lt.s32.totalorder %s18, 1
      %s192 = scalar_select %p191, %s18, 1
      %p193 = scmp.lt.s32.totalorder %s190, 1
      %s194 = scalar_select %p193, %s190, 1
      %s195 = smul.addr %s192, 4
      %s196 = sadd.s32 %s194, %s195
      %s197 = smul.addr %s196, 4
      %s198 = scalar_lea.vmem %s0, %s197
      %s199 = smul.u32 2, %s19
      %s200 = smul.u32 2, %s19
      %p201 = scmp.lt.s32.totalorder %s18, 1
      %s202 = scalar_select %p201, %s18, 1
      %p203 = scmp.lt.s32.totalorder %s200, 1
      %s204 = scalar_select %p203, %s200, 1
      %s205 = smul.addr %s202, 2
      %s206 = sadd.s32 %s204, %s205
      %s207 = smul.addr %s206, 8
      %s208 = scalar_lea.vmem %s3, %s207
      %s209 = smul.u32 2, %s19
      %v210 = vld [vmem:[%s198] sm:$0xff]
      %v211 = vunpack.c.l.bf16 %v210
      %v212 = vunpack.c.h.bf16 %v210
      %v213 = vld [vmem:[%s1] sm:$0xff]
      %215 = vset.pattern.permute.xlu0 0
      %216 = vperm.xlu0 %215, %v213
      %v217 = vpop.permute.xlu0 %216
      %v219 = vmul.f32 %v211, %v217
      %v220 = vmul.f32 %v212, %v217
      %v221 = vld [vmem:[%s2] sm:$0xff]
      %223 = vset.pattern.permute.xlu0 0
      %224 = vperm.xlu0 %223, %v221
      %v225 = vpop.permute.xlu0 %224
      %v227 = vadd.f32 %v219, %v225
      %v228 = vadd.f32 %v220, %v225
      %v229 = vmax.f32 %v227, 0.0
      %v230 = vmax.f32 %v228, 0.0
      %231 = vst [vmem:[%s208] sm:$0xff] %v229
      %232 = vst [vmem:[%s208 + $0x8] sm:$0xff] %v230
      %s233 = smul.u32 2, %s19
      %p234 = scmp.lt.s32.totalorder %s18, 1
      %s235 = scalar_select %p234, %s18, 1
      %p236 = scmp.lt.s32.totalorder %s233, 1
      %s237 = scalar_select %p236, %s233, 1
      %s238 = smul.addr %s235, 2
      %s239 = sadd.s32 %s237, %s238
      %s240 = smul.addr %s239, 8
      %s241 = scalar_lea.vmem %s3, %s240
      // Predicated region
      $region33: #{bn_conv2d_forward.3} parent=31 // pred_check
        %p242 = pneg %p116
      $region34: #{bn_conv2d_forward.3} parent=31 // pred_check_branch
        %244 = sbr.rel (%p242) target = $region36
      $region35: #{bn_conv2d_forward.3} parent=31 // pred_region
        %s245 = smul.u32 2, %s19
      $region36: #{bn_conv2d_forward.3} parent=31 // pred_fallthru
        _
    $region32: #{bn_conv2d_forward.3} parent=5 // pred_fallthru
      _
    %p246 = scmp.le.s32.totalorder 2, %s9
    // Predicated region
    $region37: #{bn_conv2d_forward.3} parent=5 // pred_check
      %p247 = pneg %p246
    $region38: #{bn_conv2d_forward.3} parent=5 // pred_check_branch
      %249 = sbr.rel (%p247) target = $region40
    $region39: #{bn_conv2d_forward.3} parent=5 // pred_region
      %s250 = ssub.s32 %s9, 2
      // Predicated region
      $region41: #{bn_conv2d_forward.3} parent=39 // pred_check
        %p251 = pneg %p122
      $region42: #{bn_conv2d_forward.3} parent=39 // pred_check_branch
        %253 = sbr.rel (%p251) target = $region44
      $region43: #{bn_conv2d_forward.3} parent=39 // pred_region
        %s254 = smul.u32 2, %s21
        %p255 = scmp.lt.s32.totalorder %s20, 1
        %s256 = scalar_select %p255, %s20, 1
        %p257 = scmp.lt.s32.totalorder %s254, 1
        %s258 = scalar_select %p257, %s254, 1
        %s259 = smul.addr %s256, 2
        %s260 = sadd.s32 %s258, %s259
        %s261 = smul.addr %s260, 8
        %s262 = scalar_lea.vmem %s3, %s261
      $region44: #{bn_conv2d_forward.3} parent=39 // pred_fallthru
        _
    $region40: #{bn_conv2d_forward.3} parent=5 // pred_fallthru
      _
  $region6: #{bn_conv2d_forward.3} parent=0 // loop_footer
    %s13 = sadd.s32 1, %s9
  $region7: #{bn_conv2d_forward.3} parent=0 // loop_footer_branch
    %8 = sbr.rel target = $region3
  $region8: #{bn_conv2d_forward.3} parent=0 // loop_exit
    _

// kernel: bn_conv2d_forward.2
$region0: #{bn_conv2d_forward.2}
  #allocation0 [shape = 'u32[]', space=smem, size = 0x4, offset = 0x4, fixed_abs, tag = 'smem constant byte address 0x4 - core index']
  #allocation1 [shape = 'u32[72,128]{1,0:T(1,128)}', space=vmem, size = 0x9000, scoped, tag = 'internal scratch']
  #allocation2 [shape = 'f32[16,256]{1,0:T(8,128)}', space=vmem, size = 0x4000, scoped, tag = 'scratch operand']
  %s0 = inlined_call_operand.vmem [shape: bf16[16,36], index: 0, kind: input, shape index: {}]
  %s1 = inlined_call_operand.vmem [shape: bf16[2,36,256], index: 1, kind: input, shape index: {}]
  %s2 = inlined_call_operand.vmem [shape: bf16[2,16,256], index: 2, kind: output, shape index: {0}]
  %s3 = inlined_call_operand.vmem [shape: f32[2,1,16,1], index: 3, kind: output, shape index: {1}]
  %s4 = inlined_call_operand.vmem [shape: f32[2,1,16,1], index: 4, kind: output, shape index: {2}]
  %5 = xla_tuple %s2, %s3, %s4
  %s6 = sld [smem:[#allocation0]]
  $region65: #{bn_conv2d_forward.2} parent=0
    _
  %s8 = ssub.s32 1, %s6
  %s9 = scalar_select 0, %s8, %s6
  loop: start=0, step=1, limit=4
  $region2: #{bn_conv2d_forward.2} parent=0 // loop_pre_header
    _
  $region3: #{bn_conv2d_forward.2} parent=0 // loop_header
    %s11 = sphi 0, %s15
    %p12 = scmp.ge.s32.totalorder %s11, 4
    %s18 = sphi 0, %s44
    %s19 = sphi 0, %s40
    %s20 = sphi 0, %s36
    %s21 = sphi 0, %s32
    %s22 = sphi 0, %s18
    %s23 = sphi 0, %s19
    %s24 = sphi 0, %s20
    %s25 = sphi 0, %s21
    %s26 = sphi 0, %s22
    %s27 = sphi 0, %s23
    %s28 = sphi 0, %s24
    %s29 = sphi 0, %s25
    %s49 = sphi 0, %s51
    %s52 = sphi 0, %s49
    %s53 = sphi 0, %s52
    %s69 = sphi 0, %s53
    %s79 = sphi 0, %s81
    %s82 = sphi 0, %s79
    %s83 = sphi 0, %s82
    %s99 = sphi 0, %s83
    %s109 = sphi 0, %s111
    %s112 = sphi 0, %s109
    %s113 = sphi 0, %s112
    %s129 = sphi 0, %s113
    %s139 = sphi 0, %s141
    %s142 = sphi 0, %s139
    %s143 = sphi 0, %s142
    %s159 = sphi 0, %s143
    %s169 = sphi 0, %s171
    %s172 = sphi 0, %s169
    %s173 = sphi 0, %s172
    %s189 = sphi 0, %s173
  $region4: #{bn_conv2d_forward.2} parent=0 // loop_header_branch
    %14 = sbr.rel (%p12) target = $region8
  $region5: #{bn_conv2d_forward.2} parent=0 // loop_body
    %s16 = ssub.s32 %s11, 1
    %s17 = ssub.s32 %s11, 2
    %s30 = sadd.s32 1, %s21
    %p31 = scmp.ge.s32.totalorder %s30, 1
    %s32 = scalar_select %p31, 0, %s30
    %s33 = sadd.s32 1, %s20
    %s34 = scalar_select %p31, %s33, %s20
    %p35 = scmp.ge.s32.totalorder %s34, 1
    %s36 = scalar_select %p35, 0, %s34
    %s37 = sadd.s32 1, %s19
    %s38 = scalar_select %p35, %s37, %s19
    %p39 = scmp.ge.s32.totalorder %s38, 1
    %s40 = scalar_select %p39, 0, %s38
    %s41 = sadd.s32 1, %s18
    %s42 = scalar_select %p39, %s41, %s18
    %p43 = scmp.ge.s32.totalorder %s42, 2
    %s44 = scalar_select %p43, 0, %s42
    %s45 = ssub.s32 %s19, %s40
    %s46 = ssub.s32 %s21, %s32
    %s47 = sor.u32 %s45, %s46
    %p48 = scmp.eq.s32.totalorder %s47, 0
    %s50 = sadd.s32 %s49, 1
    %s51 = scalar_select %p48, %s49, %s50
    %p54 = pneg %p48
    %p55 = scmp.eq.s32.totalorder %s11, 1
    %p56 = por %p54, %p55
    %p57 = scmp.ne.s32.totalorder %s49, %s52
    %p58 = scmp.eq.s32.totalorder %s11, 0
    %p59 = por %p57, %p58
    %p60 = scmp.ne.s32.totalorder %s49, %s52
    %p61 = scmp.eq.s32.totalorder %s16, 1
    %p62 = por %p60, %p61
    %p63 = scmp.ne.s32.totalorder %s52, %s53
    %p64 = scmp.eq.s32.totalorder %s16, 0
    %p65 = por %p63, %p64
    %p66 = scmp.ne.s32.totalorder %s52, %s53
    %p67 = scmp.eq.s32.totalorder %s17, 1
    %p68 = por %p66, %p67
    %p70 = scmp.ne.s32.totalorder %s53, %s69
    %p71 = scmp.eq.s32.totalorder %s17, 0
    %p72 = por %p70, %p71
    %s73 = ssub.s32 %s18, %s44
    %s74 = ssub.s32 %s21, %s32
    %s75 = sor.u32 %s73, %s74
    %s76 = ssub.s32 %s20, %s36
    %s77 = sor.u32 %s75, %s76
    %p78 = scmp.eq.s32.totalorder %s77, 0
    %s80 = sadd.s32 %s79, 1
    %s81 = scalar_select %p78, %s79, %s80
    %p84 = pneg %p78
    %p85 = scmp.eq.s32.totalorder %s11, 1
    %p86 = por %p84, %p85
    %p87 = scmp.ne.s32.totalorder %s79, %s82
    %p88 = scmp.eq.s32.totalorder %s11, 0
    %p89 = por %p87, %p88
    %p90 = scmp.ne.s32.totalorder %s79, %s82
    %p91 = scmp.eq.s32.totalorder %s16, 1
    %p92 = por %p90, %p91
    %p93 = scmp.ne.s32.totalorder %s82, %s83
    %p94 = scmp.eq.s32.totalorder %s16, 0
    %p95 = por %p93, %p94
    %p96 = scmp.ne.s32.totalorder %s82, %s83
    %p97 = scmp.eq.s32.totalorder %s17, 1
    %p98 = por %p96, %p97
    %p100 = scmp.ne.s32.totalorder %s83, %s99
    %p101 = scmp.eq.s32.totalorder %s17, 0
    %p102 = por %p100, %p101
    %s103 = ssub.s32 %s18, %s44
    %s104 = ssub.s32 %s19, %s40
    %s105 = sor.u32 %s103, %s104
    %s106 = ssub.s32 %s20, %s36
    %s107 = sor.u32 %s105, %s106
    %p108 = scmp.eq.s32.totalorder %s107, 0
    %s110 = sadd.s32 %s109, 1
    %s111 = scalar_select %p108, %s109, %s110
    %p114 = pneg %p108
    %p115 = scmp.eq.s32.totalorder %s11, 1
    %p116 = por %p114, %p115
    %p117 = scmp.ne.s32.totalorder %s109, %s112
    %p118 = scmp.eq.s32.totalorder %s11, 0
    %p119 = por %p117, %p118
    %p120 = scmp.ne.s32.totalorder %s109, %s112
    %p121 = scmp.eq.s32.totalorder %s16, 1
    %p122 = por %p120, %p121
    %p123 = scmp.ne.s32.totalorder %s112, %s113
    %p124 = scmp.eq.s32.totalorder %s16, 0
    %p125 = por %p123, %p124
    %p126 = scmp.ne.s32.totalorder %s112, %s113
    %p127 = scmp.eq.s32.totalorder %s17, 1
    %p128 = por %p126, %p127
    %p130 = scmp.ne.s32.totalorder %s113, %s129
    %p131 = scmp.eq.s32.totalorder %s17, 0
    %p132 = por %p130, %p131
    %s133 = ssub.s32 %s18, %s44
    %s134 = ssub.s32 %s20, %s36
    %s135 = sor.u32 %s133, %s134
    %s136 = ssub.s32 %s19, %s40
    %s137 = sor.u32 %s135, %s136
    %p138 = scmp.eq.s32.totalorder %s137, 0
    %s140 = sadd.s32 %s139, 1
    %s141 = scalar_select %p138, %s139, %s140
    %p144 = pneg %p138
    %p145 = scmp.eq.s32.totalorder %s11, 1
    %p146 = por %p144, %p145
    %p147 = scmp.ne.s32.totalorder %s139, %s142
    %p148 = scmp.eq.s32.totalorder %s11, 0
    %p149 = por %p147, %p148
    %p150 = scmp.ne.s32.totalorder %s139, %s142
    %p151 = scmp.eq.s32.totalorder %s16, 1
    %p152 = por %p150, %p151
    %p153 = scmp.ne.s32.totalorder %s142, %s143
    %p154 = scmp.eq.s32.totalorder %s16, 0
    %p155 = por %p153, %p154
    %p156 = scmp.ne.s32.totalorder %s142, %s143
    %p157 = scmp.eq.s32.totalorder %s17, 1
    %p158 = por %p156, %p157
    %p160 = scmp.ne.s32.totalorder %s143, %s159
    %p161 = scmp.eq.s32.totalorder %s17, 0
    %p162 = por %p160, %p161
    %s163 = ssub.s32 %s18, %s44
    %s164 = ssub.s32 %s20, %s36
    %s165 = sor.u32 %s163, %s164
    %s166 = ssub.s32 %s19, %s40
    %s167 = sor.u32 %s165, %s166
    %p168 = scmp.eq.s32.totalorder %s167, 0
    %s170 = sadd.s32 %s169, 1
    %s171 = scalar_select %p168, %s169, %s170
    %p174 = pneg %p168
    %p175 = scmp.eq.s32.totalorder %s11, 1
    %p176 = por %p174, %p175
    %p177 = scmp.ne.s32.totalorder %s169, %s172
    %p178 = scmp.eq.s32.totalorder %s11, 0
    %p179 = por %p177, %p178
    %p180 = scmp.ne.s32.totalorder %s169, %s172
    %p181 = scmp.eq.s32.totalorder %s16, 1
    %p182 = por %p180, %p181
    %p183 = scmp.ne.s32.totalorder %s172, %s173
    %p184 = scmp.eq.s32.totalorder %s16, 0
    %p185 = por %p183, %p184
    %p186 = scmp.ne.s32.totalorder %s172, %s173
    %p187 = scmp.eq.s32.totalorder %s17, 1
    %p188 = por %p186, %p187
    %p190 = scmp.ne.s32.totalorder %s173, %s189
    %p191 = scmp.eq.s32.totalorder %s17, 0
    %p192 = por %p190, %p191
    %p193 = scmp.le.s32.totalorder 1, %s11
    %p194 = scmp.lt.s32.totalorder %s11, 3
    %p195 = pnand %p193, %p194
    %p196 = pneg %p195
    // Predicated region
    $region9: #{bn_conv2d_forward.2} parent=5 // pred_check
      _
    $region10: #{bn_conv2d_forward.2} parent=5 // pred_check_branch
      %198 = sbr.rel (%p195) target = $region12
    $region11: #{bn_conv2d_forward.2} parent=5 // pred_region
      %s199 = ssub.s32 %s11, 1
      // Predicated region
      $region13: #{bn_conv2d_forward.2} parent=11 // pred_check
        %p200 = pneg %p65
      $region14: #{bn_conv2d_forward.2} parent=11 // pred_check_branch
        %202 = sbr.rel (%p200) target = $region16
      $region15: #{bn_conv2d_forward.2} parent=11 // pred_region
        %s203 = smul.u32 2, %s23
        %p204 = scmp.lt.s32.totalorder %s203, 1
        %s205 = scalar_select %p204, %s203, 1
        %p206 = scmp.lt.s32.totalorder %s25, 0
        %s207 = scalar_select %p206, %s25, 0
        %s208 = sadd.s32 %s207, %s205
        %s209 = smul.addr %s208, 4
        %s210 = scalar_lea.vmem %s0, %s209
        %s211 = smul.u32 2, %s23
      $region16: #{bn_conv2d_forward.2} parent=11 // pred_fallthru
        _
    $region12: #{bn_conv2d_forward.2} parent=5 // pred_fallthru
      _
    %p212 = scmp.lt.s32.totalorder %s11, 2
    // Predicated region
    $region17: #{bn_conv2d_forward.2} parent=5 // pred_check
      %p213 = pneg %p212
    $region18: #{bn_conv2d_forward.2} parent=5 // pred_check_branch
      %215 = sbr.rel (%p213) target = $region20
    $region19: #{bn_conv2d_forward.2} parent=5 // pred_region
      // Predicated region
      $region21: #{bn_conv2d_forward.2} parent=19 // pred_check
        %p216 = pneg %p89
      $region22: #{bn_conv2d_forward.2} parent=19 // pred_check_branch
        %218 = sbr.rel (%p216) target = $region24
      $region23: #{bn_conv2d_forward.2} parent=19 // pred_region
        %s219 = smul.u32 5, %s21
        %s220 = smul.u32 2, %s20
        %p221 = scmp.lt.s32.totalorder %s18, 1
        %s222 = scalar_select %p221, %s18, 1
        %p223 = scmp.lt.s32.totalorder %s219, 4
        %s224 = scalar_select %p223, %s219, 4
        %p225 = scmp.lt.s32.totalorder %s220, 1
        %s226 = scalar_select %p225, %s220, 1
        %s227 = smul.addr %s224, 2
        %s228 = sadd.s32 %s226, %s227
        %s229 = smul.addr %s222, 10
        %s230 = sadd.s32 %s228, %s229
        %s231 = smul.addr %s230, 4
        %s232 = scalar_lea.vmem %s1, %s231
        %s233 = smul.u32 5, %s21
        %s234 = smul.u32 2, %s20
      $region24: #{bn_conv2d_forward.2} parent=19 // pred_fallthru
        _
    $region20: #{bn_conv2d_forward.2} parent=5 // pred_fallthru
      _
    %p235 = scmp.le.s32.totalorder 1, %s11
    %p236 = scmp.lt.s32.totalorder %s11, 3
    %p237 = pnand %p235, %p236
    %p238 = pneg %p237
    // Predicated region
    $region25: #{bn_conv2d_forward.2} parent=5 // pred_check
      _
    $region26: #{bn_conv2d_forward.2} parent=5 // pred_check_branch
      %240 = sbr.rel (%p237) target = $region28
    $region27: #{bn_conv2d_forward.2} parent=5 // pred_region
      %s241 = ssub.s32 %s11, 1
      %s242 = smul.u32 2, %s23
      %p243 = scmp.lt.s32.totalorder %s242, 1
      %s244 = scalar_select %p243, %s242, 1
      %p245 = scmp.lt.s32.totalorder %s25, 0
      %s246 = scalar_select %p245, %s25, 0
      %s247 = sadd.s32 %s246, %s244
      %s248 = smul.addr %s247, 4
      %s249 = scalar_lea.vmem %s0, %s248
      %p250 = pneg %p65
      %p251 = pneg %p62
      %s252 = smul.u32 5, %s25
      %s253 = smul.u32 2, %s24
      %p254 = scmp.lt.s32.totalorder %s22, 1
      %s255 = scalar_select %p254, %s22, 1
      %p256 = scmp.lt.s32.totalorder %s252, 4
      %s257 = scalar_select %p256, %s252, 4
      %p258 = scmp.lt.s32.totalorder %s253, 1
      %s259 = scalar_select %p258, %s253, 1
      %s260 = smul.addr %s257, 2
      %s261 = sadd.s32 %s259, %s260
      %s262 = smul.addr %s255, 10
      %s263 = sadd.s32 %s261, %s262
      %s264 = smul.addr %s263, 4
      %s265 = scalar_lea.vmem %s1, %s264
      %p266 = pneg %p95
      %p267 = pneg %p92
      %p268 = pneg %p125
      %p269 = pneg %p122
      %s270 = smul.u32 2, %s23
      %s271 = smul.u32 2, %s24
      %p272 = scmp.lt.s32.totalorder %s22, 1
      %s273 = scalar_select %p272, %s22, 1
      %p274 = scmp.lt.s32.totalorder %s270, 1
      %s275 = scalar_select %p274, %s270, 1
      %p276 = scmp.lt.s32.totalorder %s271, 1
      %s277 = scalar_select %p276, %s271, 1
      %s278 = smul.addr %s275, 2
      %s279 = sadd.s32 %s277, %s278
      %s280 = smul.addr %s273, 4
      %s281 = sadd.s32 %s279, %s280
      %s282 = smul.addr %s281, 4
      %s283 = scalar_lea.vmem %s2, %s282
      %p284 = pneg %p155
      %p285 = pneg %p152
      %s286 = smul.u32 2, %s23
      %p287 = scmp.lt.s32.totalorder %s22, 1
      %s288 = scalar_select %p287, %s22, 1
      %p289 = scmp.lt.s32.totalorder %s24, 0
      %s290 = scalar_select %p289, %s24, 0
      %p291 = scmp.lt.s32.totalorder %s286, 1
      %s292 = scalar_select %p291, %s286, 1
      %s293 = smul.addr %s290, 2
      %s294 = sadd.s32 %s292, %s293
      %s295 = smul.addr %s288, 2
      %s296 = sadd.s32 %s294, %s295
      %s297 = smul.addr %s296, 8
      %s298 = scalar_lea.vmem %s3, %s297
      %p299 = pneg %p185
      %p300 = pneg %p182
      %s301 = smul.u32 2, %s23
      %p302 = scmp.lt.s32.totalorder %s22, 1
      %s303 = scalar_select %p302, %s22, 1
      %p304 = scmp.lt.s32.totalorder %s24, 0
      %s305 = scalar_select %p304, %s24, 0
      %p306 = scmp.lt.s32.totalorder %s301, 1
      %s307 = scalar_select %p306, %s301, 1
      %s308 = smul.addr %s305, 2
      %s309 = sadd.s32 %s307, %s308
      %s310 = smul.addr %s303, 2
      %s311 = sadd.s32 %s309, %s310
      %s312 = smul.addr %s311, 8
      %s313 = scalar_lea.vmem %s4, %s312
      %s314 = smul.u32 2, %s23
      %p315 = scmp.lt.s32.totalorder %s314, 1
      %s316 = scalar_select %p315, %s314, 1
      %p317 = scmp.lt.s32.totalorder %s25, 0
      %s318 = scalar_select %p317, %s25, 0
      %s319 = sadd.s32 %s318, %s316
      %s320 = smul.addr %s319, 4
      %s321 = scalar_lea.vmem %s0, %s320
      %s322 = smul.u32 2, %s23
      %s323 = smul.u32 5, %s25
      %s324 = smul.u32 2, %s24
      %p325 = scmp.lt.s32.totalorder %s22, 1
      %s326 = scalar_select %p325, %s22, 1
      %p327 = scmp.lt.s32.totalorder %s323, 4
      %s328 = scalar_select %p327, %s323, 4
      %p329 = scmp.lt.s32.totalorder %s324, 1
      %s330 = scalar_select %p329, %s324, 1
      %s331 = smul.addr %s328, 2
      %s332 = sadd.s32 %s330, %s331
      %s333 = smul.addr %s326, 10
      %s334 = sadd.s32 %s332, %s333
      %s335 = smul.addr %s334, 4
      %s336 = scalar_lea.vmem %s1, %s335
      %s337 = smul.u32 5, %s25
      %s338 = smul.u32 2, %s24
      %s339 = smul.u32 2, %s23
      %s340 = smul.u32 2, %s24
      %p341 = scmp.lt.s32.totalorder %s22, 1
      %s342 = scalar_select %p341, %s22, 1
      %p343 = scmp.lt.s32.totalorder %s339, 1
      %s344 = scalar_select %p343, %s339, 1
      %p345 = scmp.lt.s32.totalorder %s340, 1
      %s346 = scalar_select %p345, %s340, 1
      %s347 = smul.addr %s344, 2
      %s348 = sadd.s32 %s346, %s347
      %s349 = smul.addr %s342, 4
      %s350 = sadd.s32 %s348, %s349
      %s351 = smul.addr %s350, 4
      %s352 = scalar_lea.vmem %s2, %s351
      %s353 = smul.u32 2, %s23
      %s354 = smul.u32 2, %s24
      %s355 = smul.u32 2, %s23
      %p356 = scmp.lt.s32.totalorder %s22, 1
      %s357 = scalar_select %p356, %s22, 1
      %p358 = scmp.lt.s32.totalorder %s24, 0
      %s359 = scalar_select %p358, %s24, 0
      %p360 = scmp.lt.s32.totalorder %s355, 1
      %s361 = scalar_select %p360, %s355, 1
      %s362 = smul.addr %s359, 2
      %s363 = sadd.s32 %s361, %s362
      %s364 = smul.addr %s357, 2
      %s365 = sadd.s32 %s363, %s364
      %s366 = smul.addr %s365, 8
      %s367 = scalar_lea.vmem %s3, %s366
      %s368 = smul.u32 2, %s23
      %s369 = smul.u32 2, %s23
      %p370 = scmp.lt.s32.totalorder %s22, 1
      %s371 = scalar_select %p370, %s22, 1
      %p372 = scmp.lt.s32.totalorder %s24, 0
      %s373 = scalar_select %p372, %s24, 0
      %p374 = scmp.lt.s32.totalorder %s369, 1
      %s375 = scalar_select %p374, %s369, 1
      %s376 = smul.addr %s373, 2
      %s377 = sadd.s32 %s375, %s376
      %s378 = smul.addr %s371, 2
      %s379 = sadd.s32 %s377, %s378
      %s380 = smul.addr %s379, 8
      %s381 = scalar_lea.vmem %s4, %s380
      %s382 = smul.u32 2, %s23
      %p384 = scmp.eq.s32.totalorder %s25, 0
      // Predicated region
      $region29: #{bn_conv2d_forward.2} parent=27 // pred_check
        %p385 = pneg %p384
      $region30: #{bn_conv2d_forward.2} parent=27 // pred_check_branch
        %387 = sbr.rel (%p385) target = $region32
      $region31: #{bn_conv2d_forward.2} parent=27 // pred_region
        %388 = vst [vmem:[#allocation2] sm:$0xff] 0.0
        %389 = vst [vmem:[#allocation2 + $0x8] sm:$0xff] 0.0
        %390 = vst [vmem:[#allocation2 + $0x10] sm:$0xff] 0.0
        %391 = vst [vmem:[#allocation2 + $0x18] sm:$0xff] 0.0
      $region32: #{bn_conv2d_forward.2} parent=27 // pred_fallthru
        _
      %v392 = vld [vmem:[#allocation2] sm:$0xff]
      %v393 = vld [vmem:[#allocation2 + $0x8] sm:$0xff]
      %v394 = vld [vmem:[#allocation2 + $0x10] sm:$0xff]
      %v395 = vld [vmem:[#allocation2 + $0x18] sm:$0xff]
      %v396 = vld [vmem:[%s321] sm:$0xf]
      %v397 = vld [vmem:[%s321 + $0x4] sm:$0xf]
      %v398 = vld [vmem:[%s336] sm:$0xff]
      %v399 = vld [vmem:[%s336 + $0x8] sm:$0xff]
      %v400 = vld [vmem:[%s336 + $0x10] sm:$0xff]
      %v401 = vld [vmem:[%s336 + $0x18] sm:$0xff]
      %v402 = vld [vmem:[%s336 + $0x20] sm:$0x33]
      %v405 = vunpack.c.l.b16 %v396
      %v406 = vunpack.c.l.b16 %v397
      %v407 = vpack.c.b16 %v406, %v405
      %v413 = vunpack.c.l.b16 %v398
      %v414 = vunpack.c.h.b16 %v398
      %v415 = vunpack.c.l.b16 %v399
      %v416 = vunpack.c.h.b16 %v399
      %v417 = vunpack.c.l.b16 %v400
      %v418 = vunpack.c.h.b16 %v400
      %v419 = vunpack.c.l.b16 %v401
      %v420 = vunpack.c.h.b16 %v401
      %v421 = vunpack.c.l.b16 %v402
      %v422 = vunpack.c.h.b16 %v402
      %v423 = vpack.c.b16 %v415, %v413
      %v424 = vpack.c.b16 %v416, %v414
      %v425 = vpack.c.b16 %v419, %v417
      %v426 = vpack.c.b16 %v420, %v418
      %v427 = vpack.c.b16 %v421, %v421
      %v428 = vpack.c.b16 %v422, %v422
      %vm433 = vcmask 293888
      %v435 = vsel %vm433, %v407, 0
      %vm437 = vcmask 1041408
      %v439 = vsel %vm437, %v427, 0
      %v442 = vsel %vm437, %v428, 0
      %444 = vmatpush.bf16.msra.mxu0 0
      %445 = vmatpush.bf16.msra.mxu0 0
      %446 = vmatpush.bf16.msra.mxu0 0
      %447 = vmatpush.bf16.msra.mxu0 0
      %448 = vmatpush.bf16.msra.mxu0 0
      %449 = vmatpush.bf16.msra.mxu0 %v439
      %450 = vmatpush.bf16.msra.mxu0 %v425
      %451 = vmatpush.bf16.msra.mxu0 %v423
      %452 = vmatmul.bf16.gmra.mxu0 %v435
      %v453 = vpop.f32.mrf.mxu0
      %v454 = vadd.f32 0.0, %v453
      %v455 = vpop.f32.mrf.mxu0
      %v456 = vadd.f32 0.0, %v455
      %457 = vdwg.mxu0
      %458 = vmatpush.bf16.msra.mxu0 0
      %459 = vmatpush.bf16.msra.mxu0 0
      %460 = vmatpush.bf16.msra.mxu0 0
      %461 = vmatpush.bf16.msra.mxu0 0
      %462 = vmatpush.bf16.msra.mxu0 0
      %463 = vmatpush.bf16.msra.mxu0 %v442
      %464 = vmatpush.bf16.msra.mxu0 %v426
      %465 = vmatpush.bf16.msra.mxu0 %v424
      %466 = vmatmul.bf16.gmra.mxu0 %v435
      %v467 = vpop.f32.mrf.mxu0
      %v468 = vadd.f32 0.0, %v467
      %v469 = vpop.f32.mrf.mxu0
      %v470 = vadd.f32 0.0, %v469
      %471 = vdwg.mxu0
      %v472 = vadd.f32 %v392, %v454
      %v473 = vadd.f32 %v393, %v468
      %v474 = vadd.f32 %v394, %v456
      %v475 = vadd.f32 %v395, %v470
      %476 = vst [vmem:[#allocation2] sm:$0xff] %v472
      %477 = vst [vmem:[#allocation2 + $0x8] sm:$0xff] %v473
      %478 = vst [vmem:[#allocation2 + $0x10] sm:$0xff] %v474
      %479 = vst [vmem:[#allocation2 + $0x18] sm:$0xff] %v475
      // Predicated region
      $region33: #{bn_conv2d_forward.2} parent=27 // pred_check
        %p480 = pneg %p384
      $region34: #{bn_conv2d_forward.2} parent=27 // pred_check_branch
        %482 = sbr.rel (%p480) target = $region36
      $region35: #{bn_conv2d_forward.2} parent=27 // pred_region
        %v483 = vld [vmem:[#allocation2] sm:$0xff]
        %v484 = vld [vmem:[#allocation2 + $0x8] sm:$0xff]
        %v485 = vld [vmem:[#allocation2 + $0x10] sm:$0xff]
        %v486 = vld [vmem:[#allocation2 + $0x18] sm:$0xff]
        %v487 = vpack.c.bf16 %v484, %v483
        %v488 = vpack.c.bf16 %v486, %v485
        %489 = vst [vmem:[%s352] sm:$0xff] %v487
        %490 = vst [vmem:[%s352 + $0x8] sm:$0xff] %v488
        %v491 = vadd.f32 %v483, %v484
        %492 = vadd.xlane.f32.xlu0 %v491
        %v493 = vpop.xlane.xlu0 %492
        %v494 = vadd.f32 %v485, %v486
        %495 = vadd.xlane.f32.xlu0 %v494
        %v496 = vpop.xlane.xlu0 %495
        %vm497 = vcmask 7168
        %498 = vst.msk [vmem:[%s367] sm:$0xff] %vm497, %v493
        %499 = vst.msk [vmem:[%s367 + $0x8] sm:$0xff] %vm497, %v496
        %v500 = vmul.f32 %v483, %v483
        %v501 = vmul.f32 %v484, %v484
        %v502 = vmul.f32 %v485, %v485
        %v503 = vmul.f32 %v486, %v486
        %v504 = vadd.f32 %v500, %v501
        %505 = vadd.xlane.f32.xlu0 %v504
        %v506 = vpop.xlane.xlu0 %505
        %v507 = vadd.f32 %v502, %v503
        %508 = vadd.xlane.f32.xlu0 %v507
        %v509 = vpop.xlane.xlu0 %508
        %510 = vst.msk [vmem:[%s381] sm:$0xff] %vm497, %v506
        %511 = vst.msk [vmem:[%s381 + $0x8] sm:$0xff] %vm497, %v509
      $region36: #{bn_conv2d_forward.2} parent=27 // pred_fallthru
        _
      %s512 = smul.u32 2, %s23
      %s513 = smul.u32 2, %s24
      %p514 = scmp.lt.s32.totalorder %s22, 1
      %s515 = scalar_select %p514, %s22, 1
      %p516 = scmp.lt.s32.totalorder %s512, 1
      %s517 = scalar_select %p516, %s512, 1
      %p518 = scmp.lt.s32.totalorder %s513, 1
      %s519 = scalar_select %p518, %s513, 1
      %s520 = smul.addr %s517, 2
      %s521 = sadd.s32 %s519, %s520
      %s522 = smul.addr %s515, 4
      %s523 = sadd.s32 %s521, %s522
      %s524 = smul.addr %s523, 4
      %s525 = scalar_lea.vmem %s2, %s524
      %s526 = smul.u32 2, %s23
      %p527 = scmp.lt.s32.totalorder %s22, 1
      %s528 = scalar_select %p527, %s22, 1
      %p529 = scmp.lt.s32.totalorder %s24, 0
      %s530 = scalar_select %p529, %s24, 0
      %p531 = scmp.lt.s32.totalorder %s526, 1
      %s532 = scalar_select %p531, %s526, 1
      %s533 = smul.addr %s530, 2
      %s534 = sadd.s32 %s532, %s533
      %s535 = smul.addr %s528, 2
      %s536 = sadd.s32 %s534, %s535
      %s537 = smul.addr %s536, 8
      %s538 = scalar_lea.vmem %s3, %s537
      %s539 = smul.u32 2, %s23
      %p540 = scmp.lt.s32.totalorder %s22, 1
      %s541 = scalar_select %p540, %s22, 1
      %p542 = scmp.lt.s32.totalorder %s24, 0
      %s543 = scalar_select %p542, %s24, 0
      %p544 = scmp.lt.s32.totalorder %s539, 1
      %s545 = scalar_select %p544, %s539, 1
      %s546 = smul.addr %s543, 2
      %s547 = sadd.s32 %s545, %s546
      %s548 = smul.addr %s541, 2
      %s549 = sadd.s32 %s547, %s548
      %s550 = smul.addr %s549, 8
      %s551 = scalar_lea.vmem %s4, %s550
      // Predicated region
      $region37: #{bn_conv2d_forward.2} parent=27 // pred_check
        %p552 = pneg %p122
      $region38: #{bn_conv2d_forward.2} parent=27 // pred_check_branch
        %554 = sbr.rel (%p552) target = $region40
      $region39: #{bn_conv2d_forward.2} parent=27 // pred_region
        %s555 = smul.u32 2, %s23
        %s556 = smul.u32 2, %s24
      $region40: #{bn_conv2d_forward.2} parent=27 // pred_fallthru
        _
      // Predicated region
      $region41: #{bn_conv2d_forward.2} parent=27 // pred_check
        %p557 = pneg %p152
      $region42: #{bn_conv2d_forward.2} parent=27 // pred_check_branch
        %559 = sbr.rel (%p557) target = $region44
      $region43: #{bn_conv2d_forward.2} parent=27 // pred_region
        %s560 = smul.u32 2, %s23
      $region44: #{bn_conv2d_forward.2} parent=27 // pred_fallthru
        _
      // Predicated region
      $region45: #{bn_conv2d_forward.2} parent=27 // pred_check
        %p561 = pneg %p182
      $region46: #{bn_conv2d_forward.2} parent=27 // pred_check_branch
        %563 = sbr.rel (%p561) target = $region48
      $region47: #{bn_conv2d_forward.2} parent=27 // pred_region
        %s564 = smul.u32 2, %s23
      $region48: #{bn_conv2d_forward.2} parent=27 // pred_fallthru
        _
    $region28: #{bn_conv2d_forward.2} parent=5 // pred_fallthru
      _
    %p565 = scmp.le.s32.totalorder 2, %s11
    // Predicated region
    $region49: #{bn_conv2d_forward.2} parent=5 // pred_check
      %p566 = pneg %p565
    $region50: #{bn_conv2d_forward.2} parent=5 // pred_check_branch
      %568 = sbr.rel (%p566) target = $region52
    $region51: #{bn_conv2d_forward.2} parent=5 // pred_region
      %s569 = ssub.s32 %s11, 2
      // Predicated region
      $region53: #{bn_conv2d_forward.2} parent=51 // pred_check
        %p570 = pneg %p128
      $region54: #{bn_conv2d_forward.2} parent=51 // pred_check_branch
        %572 = sbr.rel (%p570) target = $region56
      $region55: #{bn_conv2d_forward.2} parent=51 // pred_region
        %s573 = smul.u32 2, %s27
        %s574 = smul.u32 2, %s28
        %p575 = scmp.lt.s32.totalorder %s26, 1
        %s576 = scalar_select %p575, %s26, 1
        %p577 = scmp.lt.s32.totalorder %s573, 1
        %s578 = scalar_select %p577, %s573, 1
        %p579 = scmp.lt.s32.totalorder %s574, 1
        %s580 = scalar_select %p579, %s574, 1
        %s581 = smul.addr %s578, 2
        %s582 = sadd.s32 %s580, %s581
        %s583 = smul.addr %s576, 4
        %s584 = sadd.s32 %s582, %s583
        %s585 = smul.addr %s584, 4
        %s586 = scalar_lea.vmem %s2, %s585
      $region56: #{bn_conv2d_forward.2} parent=51 // pred_fallthru
        _
      // Predicated region
      $region57: #{bn_conv2d_forward.2} parent=51 // pred_check
        %p587 = pneg %p158
      $region58: #{bn_conv2d_forward.2} parent=51 // pred_check_branch
        %589 = sbr.rel (%p587) target = $region60
      $region59: #{bn_conv2d_forward.2} parent=51 // pred_region
        %s590 = smul.u32 2, %s27
        %p591 = scmp.lt.s32.totalorder %s26, 1
        %s592 = scalar_select %p591, %s26, 1
        %p593 = scmp.lt.s32.totalorder %s28, 0
        %s594 = scalar_select %p593, %s28, 0
        %p595 = scmp.lt.s32.totalorder %s590, 1
        %s596 = scalar_select %p595, %s590, 1
        %s597 = smul.addr %s594, 2
        %s598 = sadd.s32 %s596, %s597
        %s599 = smul.addr %s592, 2
        %s600 = sadd.s32 %s598, %s599
        %s601 = smul.addr %s600, 8
        %s602 = scalar_lea.vmem %s3, %s601
      $region60: #{bn_conv2d_forward.2} parent=51 // pred_fallthru
        _
      // Predicated region
      $region61: #{bn_conv2d_forward.2} parent=51 // pred_check
        %p603 = pneg %p188
      $region62: #{bn_conv2d_forward.2} parent=51 // pred_check_branch
        %605 = sbr.rel (%p603) target = $region64
      $region63: #{bn_conv2d_forward.2} parent=51 // pred_region
        %s606 = smul.u32 2, %s27
        %p607 = scmp.lt.s32.totalorder %s26, 1
        %s608 = scalar_select %p607, %s26, 1
        %p609 = scmp.lt.s32.totalorder %s28, 0
        %s610 = scalar_select %p609, %s28, 0
        %p611 = scmp.lt.s32.totalorder %s606, 1
        %s612 = scalar_select %p611, %s606, 1
        %s613 = smul.addr %s610, 2
        %s614 = sadd.s32 %s612, %s613
        %s615 = smul.addr %s608, 2
        %s616 = sadd.s32 %s614, %s615
        %s617 = smul.addr %s616, 8
        %s618 = scalar_lea.vmem %s4, %s617
      $region64: #{bn_conv2d_forward.2} parent=51 // pred_fallthru
        _
    $region52: #{bn_conv2d_forward.2} parent=5 // pred_fallthru
      _
  $region6: #{bn_conv2d_forward.2} parent=0 // loop_footer
    %s15 = sadd.s32 1, %s11
  $region7: #{bn_conv2d_forward.2} parent=0 // loop_footer_branch
    %10 = sbr.rel target = $region3
  $region8: #{bn_conv2d_forward.2} parent=0 // loop_exit
    _

</llo_original>
